<compile_context>
chip_gen: v5e
topology: v5e:2x2
jax: 0.10.0
libtpu: 0.0.40
codegen_flags: <defaults>
</compile_context>

<pallas_src>
import functools
import math

import numpy as np
import jax
import jax.numpy as jnp
from jax.experimental import pallas as pl
from jax.experimental.pallas import tpu as pltpu


# ----------------------------------------------------------------------------
# Pallas kernel: fused bottleneck 1x1 conv (raw feats) + prior add + bias + ReLU
# ----------------------------------------------------------------------------
def psp_kernel(x_ref, prior_ref, w_ref, bias_ref, out_ref):
    # x_ref    : (tile, Cpad)  bf16   raw feature rows (NHWC flattened)
    # prior_ref: (tile, Opad)  bf16   folded pyramid-prior contribution
    # w_ref    : (Cpad, Opad)  bf16   bottleneck weight slice for the raw feats
    # bias_ref : (1, Opad)     f32    bottleneck bias (zero-padded columns)
    # out_ref  : (tile, Opad)
    acc = jnp.dot(x_ref[...], w_ref[...], preferred_element_type=jnp.float32)
    acc = acc + prior_ref[...].astype(jnp.float32) + bias_ref[...]
    out_ref[...] = jnp.maximum(acc, 0.0).astype(out_ref.dtype)


# ----------------------------------------------------------------------------
# Spatial linear-operator helpers (exact PyTorch semantics), cached per shape
# ----------------------------------------------------------------------------
@functools.lru_cache(maxsize=None)
def _adaptive_pool_matrix(in_size, out_size):
    """Row-stochastic matrix implementing nn.AdaptiveAvgPool along one axis."""
    P = np.zeros((out_size, in_size), np.float32)
    for i in range(out_size):
        start = (i * in_size) // out_size
        end = -((-(i + 1) * in_size) // out_size)  # ceil
        P[i, start:end] = 1.0 / (end - start)
    return P


@functools.lru_cache(maxsize=None)
def _bilinear_up_matrix(out_size, in_size):
    """F.interpolate(mode='bilinear', align_corners=True) along one axis.

    align_corners=True matches the PyTorch module, which passes it explicitly.
    """
    U = np.zeros((out_size, in_size), np.float32)
    if in_size == 1:
        U[:, 0] = 1.0
        return U
    for i in range(out_size):
        src = i * (in_size - 1) / (out_size - 1) if out_size > 1 else 0.0
        lo = min(int(math.floor(src)), in_size - 2)
        frac = src - lo
        U[i, lo] += 1.0 - frac
        U[i, lo + 1] += frac
    return U


def _round_up(x, m):
    return ((x + m - 1) // m) * m


def _choose_tile(M, max_tile=1024):
    """Row-tile selection.

    Prefers multiples of 256 (full MXU width, bf16 sublane packing) that
    divide M exactly (no row-pad copy), capped so the row grid has >= 2 steps
    when M is large enough (v7x has two TensorCores; a 1-step grid leaves one
    idle).  Falls back to a single zero-padded row block for ragged M.
    """
    cap = min(max_tile, M)
    if M >= 512:
        cap = min(cap, max(256, ((M // 2) // 256) * 256))
    for align in (256, 128, 16):
        t = (cap // align) * align
        while t >= align:
            if M % t == 0:
                return t, M
            t -= align
    if M <= cap:  # tiny ragged M: one padded tile
        t = _round_up(max(M, 8), 16)
        return t, t
    # ragged fallback: decent tile + one zero-padded trailing row block
    t = (cap // 256) * 256 if cap >= 256 else _round_up(cap, 16)
    return t, pl.cdiv(M, t) * t


# ----------------------------------------------------------------------------
# Wrapper
# ----------------------------------------------------------------------------
def psp_forward(x, params, sizes=(1, 2, 4, 8), max_tile=1024, out_dtype=None):
    """x: NCHW (or 5-D (B, T, C, H, W) like the PyTorch module)."""
    if x.ndim == 5:
        B, T = x.shape[:2]
        out = psp_forward(x.reshape((B * T,) + x.shape[2:]), params, sizes,
                          max_tile, out_dtype)
        return out.reshape((B, T) + out.shape[1:])

    N, C, H, W = x.shape
    S, _, P = params["stage_w"].shape
    O = params["wb_x"].shape[1]
    out_dtype = x.dtype if out_dtype is None else jnp.dtype(out_dtype)

    x_nhwc = jnp.transpose(x, (0, 2, 3, 1)).astype(jnp.float32)  # channels on lanes

    # Output lane padding: skip when O is already 128-aligned; otherwise pad to
    # 128 (small O) or a multiple of 256 (large O -> full 2x256 MXU width).
    if O % 128 == 0:
        Opad = O
    elif O <= 128:
        Opad = 128
    else:
        Opad = _round_up(O, 256)

    # --- glue: fold stage 1x1 conv AND the stage slice of the bottleneck weight
    #     into the tiny pooled s*s maps, then bilinear-upsample the O-channel
    #     result.  Exact: all ops before the ReLU are linear, and per-pixel
    #     channel mixing commutes with the spatial pooling/upsampling operators.
    wb_stage = params["wb_stage"]
    if Opad != O:
        wb_stage = jnp.pad(wb_stage, ((0, 0), (0, 0), (0, Opad - O)))
    prior = jnp.zeros((N, H, W, Opad), jnp.float32)
    for si, s in enumerate(sizes):
        Ph = jnp.asarray(_adaptive_pool_matrix(H, s))
        Pw = jnp.asarray(_adaptive_pool_matrix(W, s))
        Uh = jnp.asarray(_bilinear_up_matrix(H, s))
        Uw = jnp.asarray(_bilinear_up_matrix(W, s))
        w_fold = params["stage_w"][si] @ wb_stage[si]              # (C, Opad)
        pooled = jnp.einsum("ph,qw,nhwc->npqc", Ph, Pw, x_nhwc)    # (N,s,s,C)
        tiny = jnp.einsum("npqc,co->npqo", pooled, w_fold)         # (N,s,s,Opad)
        prior = prior + jnp.einsum("hp,wq,npqo->nhwo", Uh, Uw, tiny)

    # --- bottleneck weight slice for the raw feats + bias (lane-padded)
    Wx = params["wb_x"]
    bias = params["bias"].reshape(1, O)
    if Opad != O:
        Wx = jnp.pad(Wx, ((0, 0), (0, Opad - O)))
        bias = jnp.pad(bias, ((0, 0), (0, Opad - O)))

    # Optional K padding for lane-dense activation loads (skip when C is tiny).
    Cpad = C
    if C > 128 and C % 128 != 0:
        Cpad = _round_up(C, 128)
        Wx = jnp.pad(Wx, ((0, Cpad - C), (0, 0)))

    M = N * H * W
    x2d = x_nhwc.reshape(M, C)
    if Cpad != C:
        x2d = jnp.pad(x2d, ((0, 0), (0, Cpad - C)))
    prior2d = prior.reshape(M, Opad)

    tile, Mp = _choose_tile(M, max_tile)
    if Mp != M:
        # Rare ragged fallback; padded rows produce ReLU(bias) != 0 but are
        # sliced off below (note: any future fused row-reduction would see them).
        x2d = jnp.pad(x2d, ((0, Mp - M), (0, 0)))
        prior2d = jnp.pad(prior2d, ((0, Mp - M), (0, 0)))

    # bf16 streamed operands; f32 accumulate / prior add / bias / ReLU in-kernel.
    x2d = x2d.astype(jnp.bfloat16)
    prior2d = prior2d.astype(jnp.bfloat16)
    Wx = Wx.astype(jnp.bfloat16)
    bias = bias.astype(jnp.float32)

    out_isize = jnp.dtype(out_dtype).itemsize
    # VMEM budget from actual buffer need (double-buffered streams + weights).
    need = (2 * tile * Cpad * 2            # x tile (bf16), double-buffered
            + 2 * tile * Opad * 2          # prior tile (bf16), double-buffered
            + 2 * tile * Opad * out_isize  # output tile, double-buffered
            + 2 * Cpad * Opad * 2          # weights (worst case: 2 buffers)
            + 2 * Opad * 4)                # bias
    vmem_limit = int(min(max(need * 3 // 2, 16 << 20), 64 << 20))

    cost = pl.CostEstimate(
        flops=2 * Mp * Cpad * Opad,
        transcendentals=0,
        bytes_accessed=(Mp * Cpad * 2 + Mp * Opad * 2 + Cpad * Opad * 2
                        + Opad * 4 + Mp * Opad * out_isize),
    )

    def call(use_buffered):
        resident = {}
        if use_buffered:
            # Constant index map -> never re-fetched; single buffer reclaims VMEM.
            resident = dict(pipeline_mode=pl.Buffered(1))
        in_specs = [
            pl.BlockSpec((tile, Cpad), lambda i: (i, 0)),
            pl.BlockSpec((tile, Opad), lambda i: (i, 0)),
            pl.BlockSpec((Cpad, Opad), lambda i: (0, 0), **resident),
            pl.BlockSpec((1, Opad), lambda i: (0, 0), **resident),
        ]
        return pl.pallas_call(
            psp_kernel,
            out_shape=jax.ShapeDtypeStruct((Mp, Opad), out_dtype),
            grid=(Mp // tile,),
            in_specs=in_specs,
            out_specs=pl.BlockSpec((tile, Opad), lambda i: (i, 0)),
            compiler_params=pltpu.CompilerParams(
                dimension_semantics=("parallel",),
                vmem_limit_bytes=vmem_limit,
            ),
            cost_estimate=cost,
        )(x2d, prior2d, Wx, bias)

    use_buffered = hasattr(pl, "Buffered")
    try:
        out = call(use_buffered)
    except Exception:
        if not use_buffered:
            raise
        out = call(False)  # older jax without BlockSpec(pipeline_mode=...)

    out = out[:M, :O].reshape(N, H, W, O)
    return jnp.transpose(out, (0, 3, 1, 2))  # NCHW, matching the PyTorch module


# ----------------------------------------------------------------------------
# Pure-JAX f32 reference following the PyTorch op order exactly
# ----------------------------------------------------------------------------
def psp_reference(x, params, sizes=(1, 2, 4, 8)):
    N, C, H, W = x.shape
    x_nhwc = jnp.transpose(x, (0, 2, 3, 1))
    S, _, P = params["stage_w"].shape
    O = params["wb_x"].shape[1]
    priors = []
    for si, s in enumerate(sizes):
        Ph = jnp.asarray(_adaptive_pool_matrix(H, s))
        Pw = jnp.asarray(_adaptive_pool_matrix(W, s))
        Uh = jnp.asarray(_bilinear_up_matrix(H, s))
        Uw = jnp.asarray(_bilinear_up_matrix(W, s))
        pooled = jnp.einsum("ph,qw,nhwc->npqc", Ph, Pw, x_nhwc)
        conv = jnp.einsum("npqc,cf->npqf", pooled, params["stage_w"][si])
        up = jnp.einsum("hp,wq,npqf->nhwf", Uh, Uw, conv)
        priors.append(up)
    cat = jnp.concatenate(priors + [x_nhwc], axis=-1)
    Wb = jnp.concatenate([params["wb_stage"].reshape(S * P, O), params["wb_x"]], 0)
    out = jnp.maximum(jnp.einsum("nhwc,co->nhwo", cat, Wb) + params["bias"], 0.0)
    return jnp.transpose(out, (0, 3, 1, 2))


# ----------------------------------------------------------------------------
# Deterministic parameter construction (shapes follow PSP.__init__)
# ----------------------------------------------------------------------------
def make_params(key, features, per_features, out_features, sizes):
    S = len(sizes)
    ctot = per_features * S + features
    k1, k2, k3 = jax.random.split(key, 3)
    stage_w = 0.1 * jax.random.normal(k1, (S, features, per_features), jnp.float32)
    wb = 0.1 * jax.random.normal(k2, (ctot, out_features), jnp.float32)
    bias = 0.1 * jax.random.normal(k3, (out_features,), jnp.float32)
    return {
        "stage_w": stage_w,                                         # stage 1x1 convs (no bias)
        "wb_stage": wb[: S * per_features].reshape(S, per_features, out_features),
        "wb_x": wb[S * per_features :],                             # bottleneck slice for raw feats
        "bias": bias,                                               # bottleneck bias
    }


if __name__ == "__main__":
    features, per_features, out_features = 4, 2, 8
    sizes = (1, 2, 4, 8)
    N, H, W = 2, 16, 16

    key = jax.random.PRNGKey(0)
    kx, kp = jax.random.split(key)
    x = jax.random.normal(kx, (N, features, H, W), jnp.float32)   # NCHW, like PyTorch
    params = make_params(kp, features, per_features, out_features, sizes)

    y = psp_forward(x, params, sizes)
    y = jax.block_until_ready(y)

    y_ref = psp_reference(x, params, sizes)
    assert y.shape == (N, out_features, H, W)
    # bf16 streamed operands with f32 accumulation -> ~1e-3 error; 2e-2 tol.
    assert np.allclose(np.asarray(y), np.asarray(y_ref), atol=2e-2, rtol=2e-2)

    # 5-D (B, T, C, H, W) path, as in the PyTorch module.
    y5 = psp_forward(x.reshape(1, N, features, H, W), params, sizes)
    y5 = jax.block_until_ready(y5)
    assert y5.shape == (1, N, out_features, H, W)

    print("KERNEL_OK")
</pallas_src>

<mosaic_0001>
module attributes {stable_mosaic.version = 11 : i64} {
  func.func @psp_kernel(%arg0: i32, %arg1: memref<256x4xbf16, #tpu.memory_space<vmem>>, %arg2: memref<256x128xbf16, #tpu.memory_space<vmem>>, %arg3: memref<4x128xbf16, #tpu.memory_space<vmem>>, %arg4: memref<1x128xf32, #tpu.memory_space<vmem>>, %arg5: memref<256x128xf32, #tpu.memory_space<vmem>>) attributes {dimension_semantics = [#tpu.dimension_semantics<parallel>], iteration_bounds = array<i64: 2>, scalar_prefetch = 0 : i64, scratch_operands = 0 : i64, tpu.core_type = #tpu.core_type<tc>, window_params = [{transform_indices = @transform_0, window_bounds = array<i64: 256, 4>}, {transform_indices = @transform_1, window_bounds = array<i64: 256, 128>}, {pipeline_mode = #tpu.pipeline_mode<synchronous>, transform_indices = @transform_2, window_bounds = array<i64: 4, 128>}, {pipeline_mode = #tpu.pipeline_mode<synchronous>, transform_indices = @transform_3, window_bounds = array<i64: 1, 128>}, {transform_indices = @transform_4, window_bounds = array<i64: 256, 128>}]} {
    %c0 = arith.constant 0 : index
    %c0_0 = arith.constant 0 : index
    %0 = vector.load %arg1[%c0, %c0_0] : memref<256x4xbf16, #tpu.memory_space<vmem>>, vector<256x4xbf16>
    %c0_1 = arith.constant 0 : index
    %c0_2 = arith.constant 0 : index
    %1 = vector.load %arg3[%c0_1, %c0_2] : memref<4x128xbf16, #tpu.memory_space<vmem>>, vector<4x128xbf16>
    %cst = arith.constant dense<0.000000e+00> : vector<256x128xf32>
    %2 = tpu.matmul %0, %1, %cst {dimension_numbers = #tpu.dot_dimension_numbers<[1], [0], [0], [1], [0, 0, 1, 1], [], []>} : vector<256x4xbf16>, vector<4x128xbf16>, vector<256x128xf32> -> vector<256x128xf32>
    %c0_3 = arith.constant 0 : index
    %c0_4 = arith.constant 0 : index
    %3 = vector.load %arg2[%c0_3, %c0_4] : memref<256x128xbf16, #tpu.memory_space<vmem>>, vector<256x128xbf16>
    %4 = arith.extf %3 : vector<256x128xbf16> to vector<256x128xf32>
    %5 = arith.addf %2, %4 : vector<256x128xf32>
    %c0_5 = arith.constant 0 : index
    %c0_6 = arith.constant 0 : index
    %6 = vector.load %arg4[%c0_5, %c0_6] : memref<1x128xf32, #tpu.memory_space<vmem>>, vector<1x128xf32>
    %7 = vector.broadcast %6 : vector<1x128xf32> to vector<256x128xf32>
    %8 = arith.addf %5, %7 : vector<256x128xf32>
    %cst_7 = arith.constant 0.000000e+00 : f32
    %9 = vector.broadcast %cst_7 : f32 to vector<256x128xf32>
    %10 = arith.maximumf %8, %9 : vector<256x128xf32>
    %c0_8 = arith.constant 0 : index
    %c0_9 = arith.constant 0 : index
    %11 = vector.load %arg5[%c0_8, %c0_9] : memref<256x128xf32, #tpu.memory_space<vmem>>, vector<256x128xf32>
    tpu.vector_store %arg5[%c0_8, %c0_9], %10 {strides = array<i32>} : memref<256x128xf32, #tpu.memory_space<vmem>>, vector<256x128xf32>,
    return
  }
  func.func @transform_0(%arg0: i32) -> (i32, i32) {
    %c0_i32 = arith.constant 0 : i32
    %c0_i32_0 = arith.constant 0 : i32
    return %arg0, %c0_i32 : i32, i32
  }
  func.func @transform_1(%arg0: i32) -> (i32, i32) {
    %c0_i32 = arith.constant 0 : i32
    %c0_i32_0 = arith.constant 0 : i32
    return %arg0, %c0_i32 : i32, i32
  }
  func.func @transform_2(%arg0: i32) -> (i32, i32) {
    %c0_i32 = arith.constant 0 : i32
    %c0_i32_0 = arith.constant 0 : i32
    %c0_i32_1 = arith.constant 0 : i32
    return %c0_i32, %c0_i32_0 : i32, i32
  }
  func.func @transform_3(%arg0: i32) -> (i32, i32) {
    %c0_i32 = arith.constant 0 : i32
    %c0_i32_0 = arith.constant 0 : i32
    %c0_i32_1 = arith.constant 0 : i32
    return %c0_i32, %c0_i32_0 : i32, i32
  }
  func.func @transform_4(%arg0: i32) -> (i32, i32) {
    %c0_i32 = arith.constant 0 : i32
    %c0_i32_0 = arith.constant 0 : i32
    return %arg0, %c0_i32 : i32, i32
  }
}

module attributes {stable_mosaic.version = 11 : i64} {
  func.func @psp_kernel(%arg0: i32, %arg1: memref<256x4xbf16, #tpu.memory_space<vmem>>, %arg2: memref<256x128xbf16, #tpu.memory_space<vmem>>, %arg3: memref<4x128xbf16, #tpu.memory_space<vmem>>, %arg4: memref<1x128xf32, #tpu.memory_space<vmem>>, %arg5: memref<256x128xf32, #tpu.memory_space<vmem>>) attributes {dimension_semantics = [#tpu.dimension_semantics<parallel>], iteration_bounds = array<i64: 2>, scalar_prefetch = 0 : i64, scratch_operands = 0 : i64, tpu.core_type = #tpu.core_type<tc>, window_params = [{transform_indices = @transform_0, window_bounds = array<i64: 256, 4>}, {transform_indices = @transform_1, window_bounds = array<i64: 256, 128>}, {pipeline_mode = #tpu.pipeline_mode<synchronous>, transform_indices = @transform_2, window_bounds = array<i64: 4, 128>}, {pipeline_mode = #tpu.pipeline_mode<synchronous>, transform_indices = @transform_3, window_bounds = array<i64: 1, 128>}, {transform_indices = @transform_4, window_bounds = array<i64: 256, 128>}]} {
    %c0 = arith.constant 0 : index
    %c0_0 = arith.constant 0 : index
    %0 = vector.load %arg1[%c0, %c0_0] : memref<256x4xbf16, #tpu.memory_space<vmem>>, vector<256x4xbf16>
    %c0_1 = arith.constant 0 : index
    %c0_2 = arith.constant 0 : index
    %1 = vector.load %arg3[%c0_1, %c0_2] : memref<4x128xbf16, #tpu.memory_space<vmem>>, vector<4x128xbf16>
    %cst = arith.constant dense<0.000000e+00> : vector<256x128xf32>
    %2 = tpu.matmul %0, %1, %cst {dimension_numbers = #tpu.dot_dimension_numbers<[1], [0], [0], [1], [0, 0, 1, 1], [], []>} : vector<256x4xbf16>, vector<4x128xbf16>, vector<256x128xf32> -> vector<256x128xf32>
    %c0_3 = arith.constant 0 : index
    %c0_4 = arith.constant 0 : index
    %3 = vector.load %arg2[%c0_3, %c0_4] : memref<256x128xbf16, #tpu.memory_space<vmem>>, vector<256x128xbf16>
    %4 = arith.extf %3 : vector<256x128xbf16> to vector<256x128xf32>
    %5 = arith.addf %2, %4 : vector<256x128xf32>
    %c0_5 = arith.constant 0 : index
    %c0_6 = arith.constant 0 : index
    %6 = vector.load %arg4[%c0_5, %c0_6] : memref<1x128xf32, #tpu.memory_space<vmem>>, vector<1x128xf32>
    %7 = vector.broadcast %6 : vector<1x128xf32> to vector<256x128xf32>
    %8 = arith.addf %5, %7 : vector<256x128xf32>
    %cst_7 = arith.constant 0.000000e+00 : f32
    %9 = vector.broadcast %cst_7 : f32 to vector<256x128xf32>
    %10 = arith.maximumf %8, %9 : vector<256x128xf32>
    %c0_8 = arith.constant 0 : index
    %c0_9 = arith.constant 0 : index
    %11 = vector.load %arg5[%c0_8, %c0_9] : memref<256x128xf32, #tpu.memory_space<vmem>>, vector<256x128xf32>
    tpu.vector_store %arg5[%c0_8, %c0_9], %10 {strides = array<i32>} : memref<256x128xf32, #tpu.memory_space<vmem>>, vector<256x128xf32>,
    return
  }
  func.func @transform_0(%arg0: i32) -> (i32, i32) {
    %c0_i32 = arith.constant 0 : i32
    %c0_i32_0 = arith.constant 0 : i32
    return %arg0, %c0_i32 : i32, i32
  }
  func.func @transform_1(%arg0: i32) -> (i32, i32) {
    %c0_i32 = arith.constant 0 : i32
    %c0_i32_0 = arith.constant 0 : i32
    return %arg0, %c0_i32 : i32, i32
  }
  func.func @transform_2(%arg0: i32) -> (i32, i32) {
    %c0_i32 = arith.constant 0 : i32
    %c0_i32_0 = arith.constant 0 : i32
    %c0_i32_1 = arith.constant 0 : i32
    return %c0_i32, %c0_i32_0 : i32, i32
  }
  func.func @transform_3(%arg0: i32) -> (i32, i32) {
    %c0_i32 = arith.constant 0 : i32
    %c0_i32_0 = arith.constant 0 : i32
    %c0_i32_1 = arith.constant 0 : i32
    return %c0_i32, %c0_i32_0 : i32, i32
  }
  func.func @transform_4(%arg0: i32) -> (i32, i32) {
    %c0_i32 = arith.constant 0 : i32
    %c0_i32_0 = arith.constant 0 : i32
    return %arg0, %c0_i32 : i32, i32
  }
}

</mosaic_0001>

<llo_original>
// kernel: tpu_custom_call.1
$region0: #{tpu_custom_call.1}
  #allocation0 [shape = 'u32[]', space=smem, size = 0x4, offset = 0x4, fixed_abs, tag = 'smem constant byte address 0x4 - core index']
  #allocation1 [shape = 'u32[72,128]{1,0:T(1,128)}', space=vmem, size = 0x9000, scoped, tag = 'internal scratch']
  %s0 = inlined_call_operand.vmem [shape: bf16[512,4], index: 0, kind: input, shape index: {}]
  %s1 = inlined_call_operand.vmem [shape: bf16[512,128], index: 1, kind: input, shape index: {}]
  %s2 = inlined_call_operand.vmem [shape: bf16[4,128], index: 2, kind: input, shape index: {}]
  %s3 = inlined_call_operand.vmem [shape: f32[1,128], index: 3, kind: input, shape index: {}]
  %s4 = inlined_call_operand.hbm [shape: f32[512,128], index: 4, kind: output, shape index: {}]
  %s5 = sld [smem:[#allocation0]]
  $region49: #{tpu_custom_call.1} parent=0
    _
  %s7 = ssub.s32 1, %s5
  %s8 = scalar_select 0, %s7, %s5
  $region1: #{tpu_custom_call.1} parent=0
    #allocation2 [shape = 'u8[262144]{0}', space=vmem, size = 0x40000, scoped, tag = 'output window, operand 0']
    #allocation3 [shape = 's32[2]{0}', space=sflag, size = 0x8, scoped, tag = 'scoped memory for tpu_custom_call.1']
    %9 = vsyncpa [#allocation3], 0
    %s10 = scalar_lea.sflag [#allocation3], 1
    %11 = vsyncpa %s10, 0
    loop: start=0, step=1, limit=4
    $region2: #{tpu_custom_call.1} parent=1 // loop_pre_header
      _
    $region3: #{tpu_custom_call.1} parent=1 // loop_header
      %s13 = sphi 0, %s17
      %p14 = scmp.ge.s32.totalorder %s13, 4
      %s23 = sphi 0, %s25
      %s26 = sphi 0, %s23
      %s27 = sphi 0, %s26
      %s43 = sphi 0, %s27
      %s49 = sphi 0, %s51
      %s52 = sphi 0, %s49
      %s53 = sphi 0, %s52
      %s69 = sphi 0, %s53
      %s73 = sphi 0, %s73
      %s75 = sphi 0, %s73
      %s76 = sphi 0, %s75
      %s90 = sphi 0, %s76
      %s94 = sphi 0, %s94
      %s96 = sphi 0, %s94
      %s97 = sphi 0, %s96
      %s111 = sphi 0, %s97
      %s117 = sphi 0, %s119
      %s120 = sphi 0, %s117
      %s121 = sphi 0, %s120
      %s137 = sphi 0, %s121
    $region4: #{tpu_custom_call.1} parent=1 // loop_header_branch
      %16 = sbr.rel (%p14) target = $region8
    $region5: #{tpu_custom_call.1} parent=1 // loop_body
      %s18 = ssub.s32 %s13, 1
      %s19 = ssub.s32 %s13, 2
      %s20 = sadd.s32 %s13, 1
      %s21 = ssub.s32 %s13, %s20
      %p22 = scmp.eq.s32.totalorder %s21, 0
      %s24 = sadd.s32 %s23, 1
      %s25 = scalar_select %p22, %s23, %s24
      %p28 = pneg %p22
      %p29 = scmp.eq.s32.totalorder %s13, 1
      %p30 = por %p28, %p29
      %p31 = scmp.ne.s32.totalorder %s23, %s26
      %p32 = scmp.eq.s32.totalorder %s13, 0
      %p33 = por %p31, %p32
      %p34 = scmp.ne.s32.totalorder %s23, %s26
      %p35 = scmp.eq.s32.totalorder %s18, 1
      %p36 = por %p34, %p35
      %p37 = scmp.ne.s32.totalorder %s26, %s27
      %p38 = scmp.eq.s32.totalorder %s18, 0
      %p39 = por %p37, %p38
      %p40 = scmp.ne.s32.totalorder %s26, %s27
      %p41 = scmp.eq.s32.totalorder %s19, 1
      %p42 = por %p40, %p41
      %p44 = scmp.ne.s32.totalorder %s27, %s43
      %p45 = scmp.eq.s32.totalorder %s19, 0
      %p46 = por %p44, %p45
      %s47 = ssub.s32 %s13, %s20
      %p48 = scmp.eq.s32.totalorder %s47, 0
      %s50 = sadd.s32 %s49, 1
      %s51 = scalar_select %p48, %s49, %s50
      %p54 = pneg %p48
      %p55 = scmp.eq.s32.totalorder %s13, 1
      %p56 = por %p54, %p55
      %p57 = scmp.ne.s32.totalorder %s49, %s52
      %p58 = scmp.eq.s32.totalorder %s13, 0
      %p59 = por %p57, %p58
      %p60 = scmp.ne.s32.totalorder %s49, %s52
      %p61 = scmp.eq.s32.totalorder %s18, 1
      %p62 = por %p60, %p61
      %p63 = scmp.ne.s32.totalorder %s52, %s53
      %p64 = scmp.eq.s32.totalorder %s18, 0
      %p65 = por %p63, %p64
      %p66 = scmp.ne.s32.totalorder %s52, %s53
      %p67 = scmp.eq.s32.totalorder %s19, 1
      %p68 = por %p66, %p67
      %p70 = scmp.ne.s32.totalorder %s53, %s69
      %p71 = scmp.eq.s32.totalorder %s19, 0
      %p72 = por %p70, %p71
      %s74 = sadd.s32 %s73, 1
      %p77 = scmp.eq.s32.totalorder %s13, 1
      %p78 = scmp.ne.s32.totalorder %s73, %s75
      %p79 = scmp.eq.s32.totalorder %s13, 0
      %p80 = por %p78, %p79
      %p81 = scmp.ne.s32.totalorder %s73, %s75
      %p82 = scmp.eq.s32.totalorder %s18, 1
      %p83 = por %p81, %p82
      %p84 = scmp.ne.s32.totalorder %s75, %s76
      %p85 = scmp.eq.s32.totalorder %s18, 0
      %p86 = por %p84, %p85
      %p87 = scmp.ne.s32.totalorder %s75, %s76
      %p88 = scmp.eq.s32.totalorder %s19, 1
      %p89 = por %p87, %p88
      %p91 = scmp.ne.s32.totalorder %s76, %s90
      %p92 = scmp.eq.s32.totalorder %s19, 0
      %p93 = por %p91, %p92
      %s95 = sadd.s32 %s94, 1
      %p98 = scmp.eq.s32.totalorder %s13, 1
      %p99 = scmp.ne.s32.totalorder %s94, %s96
      %p100 = scmp.eq.s32.totalorder %s13, 0
      %p101 = por %p99, %p100
      %p102 = scmp.ne.s32.totalorder %s94, %s96
      %p103 = scmp.eq.s32.totalorder %s18, 1
      %p104 = por %p102, %p103
      %p105 = scmp.ne.s32.totalorder %s96, %s97
      %p106 = scmp.eq.s32.totalorder %s18, 0
      %p107 = por %p105, %p106
      %p108 = scmp.ne.s32.totalorder %s96, %s97
      %p109 = scmp.eq.s32.totalorder %s19, 1
      %p110 = por %p108, %p109
      %p112 = scmp.ne.s32.totalorder %s97, %s111
      %p113 = scmp.eq.s32.totalorder %s19, 0
      %p114 = por %p112, %p113
      %s115 = ssub.s32 %s13, %s20
      %p116 = scmp.eq.s32.totalorder %s115, 0
      %s118 = sadd.s32 %s117, 1
      %s119 = scalar_select %p116, %s117, %s118
      %p122 = pneg %p116
      %p123 = scmp.eq.s32.totalorder %s13, 1
      %p124 = por %p122, %p123
      %p125 = scmp.ne.s32.totalorder %s117, %s120
      %p126 = scmp.eq.s32.totalorder %s13, 0
      %p127 = por %p125, %p126
      %p128 = scmp.ne.s32.totalorder %s117, %s120
      %p129 = scmp.eq.s32.totalorder %s18, 1
      %p130 = por %p128, %p129
      %p131 = scmp.ne.s32.totalorder %s120, %s121
      %p132 = scmp.eq.s32.totalorder %s18, 0
      %p133 = por %p131, %p132
      %p134 = scmp.ne.s32.totalorder %s120, %s121
      %p135 = scmp.eq.s32.totalorder %s19, 1
      %p136 = por %p134, %p135
      %p138 = scmp.ne.s32.totalorder %s121, %s137
      %p139 = scmp.eq.s32.totalorder %s19, 0
      %p140 = por %p138, %p139
      %p141 = scmp.le.s32.totalorder 1, %s13
      %p142 = scmp.lt.s32.totalorder %s13, 3
      %p143 = pnand %p141, %p142
      %p144 = pneg %p143
      // Predicated region
      $region9: #{tpu_custom_call.1} parent=5 // pred_check
        _
      $region10: #{tpu_custom_call.1} parent=5 // pred_check_branch
        %146 = sbr.rel (%p143) target = $region12
      $region11: #{tpu_custom_call.1} parent=5 // pred_region
        %s147 = ssub.s32 %s13, 1
        // Predicated region
        $region13: #{tpu_custom_call.1} parent=11 // pred_check
          %p148 = pneg %p86
        $region14: #{tpu_custom_call.1} parent=11 // pred_check_branch
          %150 = sbr.rel (%p148) target = $region16
        $region15: #{tpu_custom_call.1} parent=11 // pred_region
          _
        $region16: #{tpu_custom_call.1} parent=11 // pred_fallthru
          _
        // Predicated region
        $region17: #{tpu_custom_call.1} parent=11 // pred_check
          %p151 = pneg %p107
        $region18: #{tpu_custom_call.1} parent=11 // pred_check_branch
          %153 = sbr.rel (%p151) target = $region20
        $region19: #{tpu_custom_call.1} parent=11 // pred_region
          _
        $region20: #{tpu_custom_call.1} parent=11 // pred_fallthru
          _
      $region12: #{tpu_custom_call.1} parent=5 // pred_fallthru
        _
      %p154 = scmp.lt.s32.totalorder %s13, 2
      // Predicated region
      $region21: #{tpu_custom_call.1} parent=5 // pred_check
        %p155 = pneg %p154
      $region22: #{tpu_custom_call.1} parent=5 // pred_check_branch
        %157 = sbr.rel (%p155) target = $region24
      $region23: #{tpu_custom_call.1} parent=5 // pred_region
        // Predicated region
        $region25: #{tpu_custom_call.1} parent=23 // pred_check
          %p158 = pneg %p33
        $region26: #{tpu_custom_call.1} parent=23 // pred_check_branch
          %160 = sbr.rel (%p158) target = $region28
        $region27: #{tpu_custom_call.1} parent=23 // pred_region
          %s161 = smul.u32 32, %s13
          %p162 = scmp.lt.s32.totalorder %s161, 63
          %s163 = scalar_select %p162, %s161, 63
          %s164 = smul.addr %s163, 4
          %s165 = scalar_lea.vmem %s0, %s164
          %s166 = smul.u32 32, %s13
        $region28: #{tpu_custom_call.1} parent=23 // pred_fallthru
          _
        // Predicated region
        $region29: #{tpu_custom_call.1} parent=23 // pred_check
          %p167 = pneg %p59
        $region30: #{tpu_custom_call.1} parent=23 // pred_check_branch
          %169 = sbr.rel (%p167) target = $region32
        $region31: #{tpu_custom_call.1} parent=23 // pred_region
          %s170 = smul.u32 32, %s13
          %p171 = scmp.lt.s32.totalorder %s170, 63
          %s172 = scalar_select %p171, %s170, 63
          %s173 = smul.addr %s172, 4
          %s174 = scalar_lea.vmem %s1, %s173
          %s175 = smul.u32 32, %s13
        $region32: #{tpu_custom_call.1} parent=23 // pred_fallthru
          _
      $region24: #{tpu_custom_call.1} parent=5 // pred_fallthru
        _
      %p176 = scmp.le.s32.totalorder 1, %s13
      %p177 = scmp.lt.s32.totalorder %s13, 3
      %p178 = pnand %p176, %p177
      %p179 = pneg %p178
      // Predicated region
      $region33: #{tpu_custom_call.1} parent=5 // pred_check
        _
      $region34: #{tpu_custom_call.1} parent=5 // pred_check_branch
        %181 = sbr.rel (%p178) target = $region36
      $region35: #{tpu_custom_call.1} parent=5 // pred_region
        %s182 = ssub.s32 %s13, 1
        %s183 = smul.u32 32, %s18
        %p184 = scmp.lt.s32.totalorder %s183, 63
        %s185 = scalar_select %p184, %s183, 63
        %s186 = smul.addr %s185, 4
        %s187 = scalar_lea.vmem %s0, %s186
        %p188 = pneg %p39
        %p189 = pneg %p36
        %s190 = smul.u32 32, %s18
        %p191 = scmp.lt.s32.totalorder %s190, 63
        %s192 = scalar_select %p191, %s190, 63
        %s193 = smul.addr %s192, 4
        %s194 = scalar_lea.vmem %s1, %s193
        %p195 = pneg %p65
        %p196 = pneg %p62
        %p197 = pneg %p86
        %p198 = pneg %p83
        %p199 = pneg %p107
        %p200 = pneg %p104
        %p201 = pneg %p133
        %p202 = pneg %p130
        %s203 = sand.u32 %s120, 1
        %s204 = scalar_lea.sflag [#allocation3], %s203
        %s205 = sand.u32 %s120, 1
        %s206 = smul.addr %s205, 256
        %s207 = scalar_lea.vmem [#allocation2], %s206
        %s208 = smul.u32 32, %s18
        %p209 = scmp.lt.s32.totalorder %s208, 63
        %s210 = scalar_select %p209, %s208, 63
        %s211 = smul.addr %s210, 4
        %s212 = scalar_lea.vmem %s0, %s211
        %s213 = smul.u32 32, %s18
        %s214 = smul.u32 32, %s18
        %p215 = scmp.lt.s32.totalorder %s214, 63
        %s216 = scalar_select %p215, %s214, 63
        %s217 = smul.addr %s216, 4
        %s218 = scalar_lea.vmem %s1, %s217
        %s219 = smul.u32 32, %s18
        %s220 = smul.u32 32, %s18
        %v222 = vld [vmem:[%s212] sm:$0xf]
        %v223 = vld [vmem:[%s212 + $0x4] sm:$0xf]
        %v224 = vld [vmem:[%s212 + $0x8] sm:$0xf]
        %v225 = vld [vmem:[%s212 + $0xc] sm:$0xf]
        %v226 = vld [vmem:[%s212 + $0x10] sm:$0xf]
        %v227 = vld [vmem:[%s212 + $0x14] sm:$0xf]
        %v228 = vld [vmem:[%s212 + $0x18] sm:$0xf]
        %v229 = vld [vmem:[%s212 + $0x1c] sm:$0xf]
        %v230 = vld [vmem:[%s212 + $0x20] sm:$0xf]
        %v231 = vld [vmem:[%s212 + $0x24] sm:$0xf]
        %v232 = vld [vmem:[%s212 + $0x28] sm:$0xf]
        %v233 = vld [vmem:[%s212 + $0x2c] sm:$0xf]
        %v234 = vld [vmem:[%s212 + $0x30] sm:$0xf]
        %v235 = vld [vmem:[%s212 + $0x34] sm:$0xf]
        %v236 = vld [vmem:[%s212 + $0x38] sm:$0xf]
        %v237 = vld [vmem:[%s212 + $0x3c] sm:$0xf]
        %v238 = vld [vmem:[%s212 + $0x40] sm:$0xf]
        %v239 = vld [vmem:[%s212 + $0x44] sm:$0xf]
        %v240 = vld [vmem:[%s212 + $0x48] sm:$0xf]
        %v241 = vld [vmem:[%s212 + $0x4c] sm:$0xf]
        %v242 = vld [vmem:[%s212 + $0x50] sm:$0xf]
        %v243 = vld [vmem:[%s212 + $0x54] sm:$0xf]
        %v244 = vld [vmem:[%s212 + $0x58] sm:$0xf]
        %v245 = vld [vmem:[%s212 + $0x5c] sm:$0xf]
        %v246 = vld [vmem:[%s212 + $0x60] sm:$0xf]
        %v247 = vld [vmem:[%s212 + $0x64] sm:$0xf]
        %v248 = vld [vmem:[%s212 + $0x68] sm:$0xf]
        %v249 = vld [vmem:[%s212 + $0x6c] sm:$0xf]
        %v250 = vld [vmem:[%s212 + $0x70] sm:$0xf]
        %v251 = vld [vmem:[%s212 + $0x74] sm:$0xf]
        %v252 = vld [vmem:[%s212 + $0x78] sm:$0xf]
        %v253 = vld [vmem:[%s212 + $0x7c] sm:$0xf]
        %v254 = vld [vmem:[%s2] sm:$0x3]
        %v255 = vld [vmem:[%s218] sm:$0xf]
        %v256 = vld [vmem:[%s218 + $0x4] sm:$0xf]
        %v257 = vld [vmem:[%s218 + $0x8] sm:$0xf]
        %v258 = vld [vmem:[%s218 + $0xc] sm:$0xf]
        %v259 = vld [vmem:[%s218 + $0x10] sm:$0xf]
        %v260 = vld [vmem:[%s218 + $0x14] sm:$0xf]
        %v261 = vld [vmem:[%s218 + $0x18] sm:$0xf]
        %v262 = vld [vmem:[%s218 + $0x1c] sm:$0xf]
        %v263 = vld [vmem:[%s218 + $0x20] sm:$0xf]
        %v264 = vld [vmem:[%s218 + $0x24] sm:$0xf]
        %v265 = vld [vmem:[%s218 + $0x28] sm:$0xf]
        %v266 = vld [vmem:[%s218 + $0x2c] sm:$0xf]
        %v267 = vld [vmem:[%s218 + $0x30] sm:$0xf]
        %v268 = vld [vmem:[%s218 + $0x34] sm:$0xf]
        %v269 = vld [vmem:[%s218 + $0x38] sm:$0xf]
        %v270 = vld [vmem:[%s218 + $0x3c] sm:$0xf]
        %v271 = vld [vmem:[%s218 + $0x40] sm:$0xf]
        %v272 = vld [vmem:[%s218 + $0x44] sm:$0xf]
        %v273 = vld [vmem:[%s218 + $0x48] sm:$0xf]
        %v274 = vld [vmem:[%s218 + $0x4c] sm:$0xf]
        %v275 = vld [vmem:[%s218 + $0x50] sm:$0xf]
        %v276 = vld [vmem:[%s218 + $0x54] sm:$0xf]
        %v277 = vld [vmem:[%s218 + $0x58] sm:$0xf]
        %v278 = vld [vmem:[%s218 + $0x5c] sm:$0xf]
        %v279 = vld [vmem:[%s218 + $0x60] sm:$0xf]
        %v280 = vld [vmem:[%s218 + $0x64] sm:$0xf]
        %v281 = vld [vmem:[%s218 + $0x68] sm:$0xf]
        %v282 = vld [vmem:[%s218 + $0x6c] sm:$0xf]
        %v283 = vld [vmem:[%s218 + $0x70] sm:$0xf]
        %v284 = vld [vmem:[%s218 + $0x74] sm:$0xf]
        %v285 = vld [vmem:[%s218 + $0x78] sm:$0xf]
        %v286 = vld [vmem:[%s218 + $0x7c] sm:$0xf]
        %v287 = vunpack.c.l.bf16 %v255
        %v288 = vunpack.c.l.bf16 %v256
        %v289 = vunpack.c.l.bf16 %v257
        %v290 = vunpack.c.l.bf16 %v258
        %v291 = vunpack.c.l.bf16 %v259
        %v292 = vunpack.c.l.bf16 %v260
        %v293 = vunpack.c.l.bf16 %v261
        %v294 = vunpack.c.l.bf16 %v262
        %v295 = vunpack.c.l.bf16 %v263
        %v296 = vunpack.c.l.bf16 %v264
        %v297 = vunpack.c.l.bf16 %v265
        %v298 = vunpack.c.l.bf16 %v266
        %v299 = vunpack.c.l.bf16 %v267
        %v300 = vunpack.c.l.bf16 %v268
        %v301 = vunpack.c.l.bf16 %v269
        %v302 = vunpack.c.l.bf16 %v270
        %v303 = vunpack.c.l.bf16 %v271
        %v304 = vunpack.c.l.bf16 %v272
        %v305 = vunpack.c.l.bf16 %v273
        %v306 = vunpack.c.l.bf16 %v274
        %v307 = vunpack.c.l.bf16 %v275
        %v308 = vunpack.c.l.bf16 %v276
        %v309 = vunpack.c.l.bf16 %v277
        %v310 = vunpack.c.l.bf16 %v278
        %v311 = vunpack.c.l.bf16 %v279
        %v312 = vunpack.c.l.bf16 %v280
        %v313 = vunpack.c.l.bf16 %v281
        %v314 = vunpack.c.l.bf16 %v282
        %v315 = vunpack.c.l.bf16 %v283
        %v316 = vunpack.c.l.bf16 %v284
        %v317 = vunpack.c.l.bf16 %v285
        %v318 = vunpack.c.l.bf16 %v286
        %v351 = vunpack.c.l.b16 %v222
        %v352 = vunpack.c.l.b16 %v223
        %v353 = vunpack.c.l.b16 %v224
        %v354 = vunpack.c.l.b16 %v225
        %v355 = vunpack.c.l.b16 %v226
        %v356 = vunpack.c.l.b16 %v227
        %v357 = vunpack.c.l.b16 %v228
        %v358 = vunpack.c.l.b16 %v229
        %v359 = vunpack.c.l.b16 %v230
        %v360 = vunpack.c.l.b16 %v231
        %v361 = vunpack.c.l.b16 %v232
        %v362 = vunpack.c.l.b16 %v233
        %v363 = vunpack.c.l.b16 %v234
        %v364 = vunpack.c.l.b16 %v235
        %v365 = vunpack.c.l.b16 %v236
        %v366 = vunpack.c.l.b16 %v237
        %v367 = vunpack.c.l.b16 %v238
        %v368 = vunpack.c.l.b16 %v239
        %v369 = vunpack.c.l.b16 %v240
        %v370 = vunpack.c.l.b16 %v241
        %v371 = vunpack.c.l.b16 %v242
        %v372 = vunpack.c.l.b16 %v243
        %v373 = vunpack.c.l.b16 %v244
        %v374 = vunpack.c.l.b16 %v245
        %v375 = vunpack.c.l.b16 %v246
        %v376 = vunpack.c.l.b16 %v247
        %v377 = vunpack.c.l.b16 %v248
        %v378 = vunpack.c.l.b16 %v249
        %v379 = vunpack.c.l.b16 %v250
        %v380 = vunpack.c.l.b16 %v251
        %v381 = vunpack.c.l.b16 %v252
        %v382 = vunpack.c.l.b16 %v253
        %v383 = vpack.c.b16 %v352, %v351
        %v384 = vpack.c.b16 %v354, %v353
        %v385 = vpack.c.b16 %v356, %v355
        %v386 = vpack.c.b16 %v358, %v357
        %v387 = vpack.c.b16 %v360, %v359
        %v388 = vpack.c.b16 %v362, %v361
        %v389 = vpack.c.b16 %v364, %v363
        %v390 = vpack.c.b16 %v366, %v365
        %v391 = vpack.c.b16 %v368, %v367
        %v392 = vpack.c.b16 %v370, %v369
        %v393 = vpack.c.b16 %v372, %v371
        %v394 = vpack.c.b16 %v374, %v373
        %v395 = vpack.c.b16 %v376, %v375
        %v396 = vpack.c.b16 %v378, %v377
        %v397 = vpack.c.b16 %v380, %v379
        %v398 = vpack.c.b16 %v382, %v381
        %vm399 = vcmask 31744
        %v401 = vsel %vm399, %v383, 0
        %v404 = vsel %vm399, %v384, 0
        %v407 = vsel %vm399, %v385, 0
        %v410 = vsel %vm399, %v386, 0
        %v413 = vsel %vm399, %v387, 0
        %v416 = vsel %vm399, %v388, 0
        %v419 = vsel %vm399, %v389, 0
        %v422 = vsel %vm399, %v390, 0
        %v425 = vsel %vm399, %v391, 0
        %v428 = vsel %vm399, %v392, 0
        %v431 = vsel %vm399, %v393, 0
        %v434 = vsel %vm399, %v394, 0
        %v437 = vsel %vm399, %v395, 0
        %v440 = vsel %vm399, %v396, 0
        %v443 = vsel %vm399, %v397, 0
        %v446 = vsel %vm399, %v398, 0
        %vm448 = vcmask 1041408
        %v450 = vsel %vm448, %v254, 0
        %452 = vmatpush.bf16.msra.mxu0 0
        %453 = vmatpush.bf16.msra.mxu0 0
        %454 = vmatpush.bf16.msra.mxu0 0
        %455 = vmatpush.bf16.msra.mxu0 0
        %456 = vmatpush.bf16.msra.mxu0 0
        %457 = vmatpush.bf16.msra.mxu0 0
        %458 = vmatpush.bf16.msra.mxu0 0
        %459 = vmatpush.bf16.msra.mxu0 %v450
        %460 = vmatmul.bf16.gmra.mxu0 %v401
        %v461 = vpop.f32.mrf.mxu0
        %v462 = vadd.f32 %v287, %v461
        %v463 = vpop.f32.mrf.mxu0
        %v464 = vadd.f32 %v288, %v463
        %465 = vmatmul.bf16.gmra.mxu0 %v404
        %v466 = vpop.f32.mrf.mxu0
        %v467 = vadd.f32 %v289, %v466
        %v468 = vpop.f32.mrf.mxu0
        %v469 = vadd.f32 %v290, %v468
        %470 = vmatmul.bf16.gmra.mxu0 %v407
        %v471 = vpop.f32.mrf.mxu0
        %v472 = vadd.f32 %v291, %v471
        %v473 = vpop.f32.mrf.mxu0
        %v474 = vadd.f32 %v292, %v473
        %475 = vmatmul.bf16.gmra.mxu0 %v410
        %v476 = vpop.f32.mrf.mxu0
        %v477 = vadd.f32 %v293, %v476
        %v478 = vpop.f32.mrf.mxu0
        %v479 = vadd.f32 %v294, %v478
        %480 = vmatmul.bf16.gmra.mxu0 %v413
        %v481 = vpop.f32.mrf.mxu0
        %v482 = vadd.f32 %v295, %v481
        %v483 = vpop.f32.mrf.mxu0
        %v484 = vadd.f32 %v296, %v483
        %485 = vmatmul.bf16.gmra.mxu0 %v416
        %v486 = vpop.f32.mrf.mxu0
        %v487 = vadd.f32 %v297, %v486
        %v488 = vpop.f32.mrf.mxu0
        %v489 = vadd.f32 %v298, %v488
        %490 = vmatmul.bf16.gmra.mxu0 %v419
        %v491 = vpop.f32.mrf.mxu0
        %v492 = vadd.f32 %v299, %v491
        %v493 = vpop.f32.mrf.mxu0
        %v494 = vadd.f32 %v300, %v493
        %495 = vmatmul.bf16.gmra.mxu0 %v422
        %v496 = vpop.f32.mrf.mxu0
        %v497 = vadd.f32 %v301, %v496
        %v498 = vpop.f32.mrf.mxu0
        %v499 = vadd.f32 %v302, %v498
        %500 = vmatmul.bf16.gmra.mxu0 %v425
        %v501 = vpop.f32.mrf.mxu0
        %v502 = vadd.f32 %v303, %v501
        %v503 = vpop.f32.mrf.mxu0
        %v504 = vadd.f32 %v304, %v503
        %505 = vmatmul.bf16.gmra.mxu0 %v428
        %v506 = vpop.f32.mrf.mxu0
        %v507 = vadd.f32 %v305, %v506
        %v508 = vpop.f32.mrf.mxu0
        %v509 = vadd.f32 %v306, %v508
        %510 = vmatmul.bf16.gmra.mxu0 %v431
        %v511 = vpop.f32.mrf.mxu0
        %v512 = vadd.f32 %v307, %v511
        %v513 = vpop.f32.mrf.mxu0
        %v514 = vadd.f32 %v308, %v513
        %515 = vmatmul.bf16.gmra.mxu0 %v434
        %v516 = vpop.f32.mrf.mxu0
        %v517 = vadd.f32 %v309, %v516
        %v518 = vpop.f32.mrf.mxu0
        %v519 = vadd.f32 %v310, %v518
        %520 = vmatmul.bf16.gmra.mxu0 %v437
        %v521 = vpop.f32.mrf.mxu0
        %v522 = vadd.f32 %v311, %v521
        %v523 = vpop.f32.mrf.mxu0
        %v524 = vadd.f32 %v312, %v523
        %525 = vmatmul.bf16.gmra.mxu0 %v440
        %v526 = vpop.f32.mrf.mxu0
        %v527 = vadd.f32 %v313, %v526
        %v528 = vpop.f32.mrf.mxu0
        %v529 = vadd.f32 %v314, %v528
        %530 = vmatmul.bf16.gmra.mxu0 %v443
        %v531 = vpop.f32.mrf.mxu0
        %v532 = vadd.f32 %v315, %v531
        %v533 = vpop.f32.mrf.mxu0
        %v534 = vadd.f32 %v316, %v533
        %535 = vmatmul.bf16.gmra.mxu0 %v446
        %v536 = vpop.f32.mrf.mxu0
        %v537 = vadd.f32 %v317, %v536
        %v538 = vpop.f32.mrf.mxu0
        %v539 = vadd.f32 %v318, %v538
        %540 = vdwg.mxu0
        %v541 = vld [vmem:[%s3] sm:$0x1]
        %v543 = vperm.slane %v541, 0
        %v545 = vadd.f32 %v462, %v543
        %v546 = vadd.f32 %v464, %v543
        %v547 = vadd.f32 %v467, %v543
        %v548 = vadd.f32 %v469, %v543
        %v549 = vadd.f32 %v472, %v543
        %v550 = vadd.f32 %v474, %v543
        %v551 = vadd.f32 %v477, %v543
        %v552 = vadd.f32 %v479, %v543
        %v553 = vadd.f32 %v482, %v543
        %v554 = vadd.f32 %v484, %v543
        %v555 = vadd.f32 %v487, %v543
        %v556 = vadd.f32 %v489, %v543
        %v557 = vadd.f32 %v492, %v543
        %v558 = vadd.f32 %v494, %v543
        %v559 = vadd.f32 %v497, %v543
        %v560 = vadd.f32 %v499, %v543
        %v561 = vadd.f32 %v502, %v543
        %v562 = vadd.f32 %v504, %v543
        %v563 = vadd.f32 %v507, %v543
        %v564 = vadd.f32 %v509, %v543
        %v565 = vadd.f32 %v512, %v543
        %v566 = vadd.f32 %v514, %v543
        %v567 = vadd.f32 %v517, %v543
        %v568 = vadd.f32 %v519, %v543
        %v569 = vadd.f32 %v522, %v543
        %v570 = vadd.f32 %v524, %v543
        %v571 = vadd.f32 %v527, %v543
        %v572 = vadd.f32 %v529, %v543
        %v573 = vadd.f32 %v532, %v543
        %v574 = vadd.f32 %v534, %v543
        %v575 = vadd.f32 %v537, %v543
        %v576 = vadd.f32 %v539, %v543
        %v577 = vmax.f32 %v545, 0.0
        %v578 = vmax.f32 %v546, 0.0
        %v579 = vmax.f32 %v547, 0.0
        %v580 = vmax.f32 %v548, 0.0
        %v581 = vmax.f32 %v549, 0.0
        %v582 = vmax.f32 %v550, 0.0
        %v583 = vmax.f32 %v551, 0.0
        %v584 = vmax.f32 %v552, 0.0
        %v585 = vmax.f32 %v553, 0.0
        %v586 = vmax.f32 %v554, 0.0
        %v587 = vmax.f32 %v555, 0.0
        %v588 = vmax.f32 %v556, 0.0
        %v589 = vmax.f32 %v557, 0.0
        %v590 = vmax.f32 %v558, 0.0
        %v591 = vmax.f32 %v559, 0.0
        %v592 = vmax.f32 %v560, 0.0
        %v593 = vmax.f32 %v561, 0.0
        %v594 = vmax.f32 %v562, 0.0
        %v595 = vmax.f32 %v563, 0.0
        %v596 = vmax.f32 %v564, 0.0
        %v597 = vmax.f32 %v565, 0.0
        %v598 = vmax.f32 %v566, 0.0
        %v599 = vmax.f32 %v567, 0.0
        %v600 = vmax.f32 %v568, 0.0
        %v601 = vmax.f32 %v569, 0.0
        %v602 = vmax.f32 %v570, 0.0
        %v603 = vmax.f32 %v571, 0.0
        %v604 = vmax.f32 %v572, 0.0
        %v605 = vmax.f32 %v573, 0.0
        %v606 = vmax.f32 %v574, 0.0
        %v607 = vmax.f32 %v575, 0.0
        %v608 = vmax.f32 %v576, 0.0
        %609 = vst [vmem:[%s207] sm:$0xff] %v577
        %610 = vst [vmem:[%s207 + $0x8] sm:$0xff] %v578
        %611 = vst [vmem:[%s207 + $0x10] sm:$0xff] %v579
        %612 = vst [vmem:[%s207 + $0x18] sm:$0xff] %v580
        %613 = vst [vmem:[%s207 + $0x20] sm:$0xff] %v581
        %614 = vst [vmem:[%s207 + $0x28] sm:$0xff] %v582
        %615 = vst [vmem:[%s207 + $0x30] sm:$0xff] %v583
        %616 = vst [vmem:[%s207 + $0x38] sm:$0xff] %v584
        %617 = vst [vmem:[%s207 + $0x40] sm:$0xff] %v585
        %618 = vst [vmem:[%s207 + $0x48] sm:$0xff] %v586
        %619 = vst [vmem:[%s207 + $0x50] sm:$0xff] %v587
        %620 = vst [vmem:[%s207 + $0x58] sm:$0xff] %v588
        %621 = vst [vmem:[%s207 + $0x60] sm:$0xff] %v589
        %622 = vst [vmem:[%s207 + $0x68] sm:$0xff] %v590
        %623 = vst [vmem:[%s207 + $0x70] sm:$0xff] %v591
        %624 = vst [vmem:[%s207 + $0x78] sm:$0xff] %v592
        %625 = vst [vmem:[%s207 + $0x80] sm:$0xff] %v593
        %626 = vst [vmem:[%s207 + $0x88] sm:$0xff] %v594
        %627 = vst [vmem:[%s207 + $0x90] sm:$0xff] %v595
        %628 = vst [vmem:[%s207 + $0x98] sm:$0xff] %v596
        %629 = vst [vmem:[%s207 + $0xa0] sm:$0xff] %v597
        %630 = vst [vmem:[%s207 + $0xa8] sm:$0xff] %v598
        %631 = vst [vmem:[%s207 + $0xb0] sm:$0xff] %v599
        %632 = vst [vmem:[%s207 + $0xb8] sm:$0xff] %v600
        %633 = vst [vmem:[%s207 + $0xc0] sm:$0xff] %v601
        %634 = vst [vmem:[%s207 + $0xc8] sm:$0xff] %v602
        %635 = vst [vmem:[%s207 + $0xd0] sm:$0xff] %v603
        %636 = vst [vmem:[%s207 + $0xd8] sm:$0xff] %v604
        %637 = vst [vmem:[%s207 + $0xe0] sm:$0xff] %v605
        %638 = vst [vmem:[%s207 + $0xe8] sm:$0xff] %v606
        %639 = vst [vmem:[%s207 + $0xf0] sm:$0xff] %v607
        %640 = vst [vmem:[%s207 + $0xf8] sm:$0xff] %v608
        %s641 = sand.u32 %s120, 1
        %s642 = scalar_lea.sflag [#allocation3], %s641
        %s643 = sand.u32 %s120, 1
        %s644 = smul.addr %s643, 256
        %s645 = scalar_lea.vmem [#allocation2], %s644
        // Predicated region
        $region37: #{tpu_custom_call.1} parent=35 // pred_check
          %p646 = pneg %p130
        $region38: #{tpu_custom_call.1} parent=35 // pred_check_branch
          %648 = sbr.rel (%p646) target = $region40
        $region39: #{tpu_custom_call.1} parent=35 // pred_region
          %s649 = smul.u32 32, %s18
          %651 = vsyncadd %s642, 0
          %s652 = smul.addr %s649, 8
          %s653 = scalar_lea.hbm %s4, %s652
          %s654 = sshll.u32 %s645, 4
          %s655 = int_to_ptr.vmem [resolvable:$true] %s654
          %s656 = sshll.u32 %s653, 4
          %s657 = int_to_ptr.hbm [resolvable:$true] %s656
          %662 = dma.vmem_to_hbm [thread:$0]  %s655, 4096, %s657, %s642, 128, 128, 8
        $region40: #{tpu_custom_call.1} parent=35 // pred_fallthru
          _
      $region36: #{tpu_custom_call.1} parent=5 // pred_fallthru
        _
      %p663 = scmp.le.s32.totalorder 2, %s13
      // Predicated region
      $region41: #{tpu_custom_call.1} parent=5 // pred_check
        %p664 = pneg %p663
      $region42: #{tpu_custom_call.1} parent=5 // pred_check_branch
        %666 = sbr.rel (%p664) target = $region44
      $region43: #{tpu_custom_call.1} parent=5 // pred_region
        %s667 = ssub.s32 %s13, 2
        // Predicated region
        $region45: #{tpu_custom_call.1} parent=43 // pred_check
          %p668 = pneg %p136
        $region46: #{tpu_custom_call.1} parent=43 // pred_check_branch
          %670 = sbr.rel (%p668) target = $region48
        $region47: #{tpu_custom_call.1} parent=43 // pred_region
          %s671 = sand.u32 %s121, 1
          %s672 = scalar_lea.sflag [#allocation3], %s671
          %s673 = sand.u32 %s121, 1
          %s674 = smul.addr %s673, 256
          %s675 = scalar_lea.vmem [#allocation2], %s674
          %677 = dma.done %s672, 4096
        $region48: #{tpu_custom_call.1} parent=43 // pred_fallthru
          _
      $region44: #{tpu_custom_call.1} parent=5 // pred_fallthru
        _
    $region6: #{tpu_custom_call.1} parent=1 // loop_footer
      %s17 = sadd.s32 1, %s13
    $region7: #{tpu_custom_call.1} parent=1 // loop_footer_branch
      %12 = sbr.rel target = $region3
    $region8: #{tpu_custom_call.1} parent=1 // loop_exit
      _
    %678 = vsyncpa [#allocation3], 1
    %s679 = scalar_lea.sflag [#allocation3], 1
    %680 = vsyncpa %s679, 1

// kernel: tpu_custom_call.1
$region0: #{tpu_custom_call.1}
  #allocation0 [shape = 'u32[]', space=smem, size = 0x4, offset = 0x4, fixed_abs, tag = 'smem constant byte address 0x4 - core index']
  #allocation1 [shape = 'u32[72,128]{1,0:T(1,128)}', space=vmem, size = 0x9000, scoped, tag = 'internal scratch']
  %s0 = inlined_call_operand.vmem [shape: bf16[512,4], index: 0, kind: input, shape index: {}]
  %s1 = inlined_call_operand.vmem [shape: bf16[512,128], index: 1, kind: input, shape index: {}]
  %s2 = inlined_call_operand.vmem [shape: bf16[4,128], index: 2, kind: input, shape index: {}]
  %s3 = inlined_call_operand.vmem [shape: f32[1,128], index: 3, kind: input, shape index: {}]
  %s4 = inlined_call_operand.hbm [shape: f32[512,128], index: 4, kind: output, shape index: {}]
  %s5 = sld [smem:[#allocation0]]
  $region49: #{tpu_custom_call.1} parent=0
    _
  %s7 = ssub.s32 1, %s5
  %s8 = scalar_select 0, %s7, %s5
  $region1: #{tpu_custom_call.1} parent=0
    #allocation2 [shape = 'u8[262144]{0}', space=vmem, size = 0x40000, scoped, tag = 'output window, operand 0']
    #allocation3 [shape = 's32[2]{0}', space=sflag, size = 0x8, scoped, tag = 'scoped memory for tpu_custom_call.1']
    %9 = vsyncpa [#allocation3], 0
    %s10 = scalar_lea.sflag [#allocation3], 1
    %11 = vsyncpa %s10, 0
    loop: start=0, step=1, limit=4
    $region2: #{tpu_custom_call.1} parent=1 // loop_pre_header
      _
    $region3: #{tpu_custom_call.1} parent=1 // loop_header
      %s13 = sphi 0, %s17
      %p14 = scmp.ge.s32.totalorder %s13, 4
      %s23 = sphi 0, %s25
      %s26 = sphi 0, %s23
      %s27 = sphi 0, %s26
      %s43 = sphi 0, %s27
      %s49 = sphi 0, %s51
      %s52 = sphi 0, %s49
      %s53 = sphi 0, %s52
      %s69 = sphi 0, %s53
      %s73 = sphi 0, %s73
      %s75 = sphi 0, %s73
      %s76 = sphi 0, %s75
      %s90 = sphi 0, %s76
      %s94 = sphi 0, %s94
      %s96 = sphi 0, %s94
      %s97 = sphi 0, %s96
      %s111 = sphi 0, %s97
      %s117 = sphi 0, %s119
      %s120 = sphi 0, %s117
      %s121 = sphi 0, %s120
      %s137 = sphi 0, %s121
    $region4: #{tpu_custom_call.1} parent=1 // loop_header_branch
      %16 = sbr.rel (%p14) target = $region8
    $region5: #{tpu_custom_call.1} parent=1 // loop_body
      %s18 = ssub.s32 %s13, 1
      %s19 = ssub.s32 %s13, 2
      %s20 = sadd.s32 %s13, 1
      %s21 = ssub.s32 %s13, %s20
      %p22 = scmp.eq.s32.totalorder %s21, 0
      %s24 = sadd.s32 %s23, 1
      %s25 = scalar_select %p22, %s23, %s24
      %p28 = pneg %p22
      %p29 = scmp.eq.s32.totalorder %s13, 1
      %p30 = por %p28, %p29
      %p31 = scmp.ne.s32.totalorder %s23, %s26
      %p32 = scmp.eq.s32.totalorder %s13, 0
      %p33 = por %p31, %p32
      %p34 = scmp.ne.s32.totalorder %s23, %s26
      %p35 = scmp.eq.s32.totalorder %s18, 1
      %p36 = por %p34, %p35
      %p37 = scmp.ne.s32.totalorder %s26, %s27
      %p38 = scmp.eq.s32.totalorder %s18, 0
      %p39 = por %p37, %p38
      %p40 = scmp.ne.s32.totalorder %s26, %s27
      %p41 = scmp.eq.s32.totalorder %s19, 1
      %p42 = por %p40, %p41
      %p44 = scmp.ne.s32.totalorder %s27, %s43
      %p45 = scmp.eq.s32.totalorder %s19, 0
      %p46 = por %p44, %p45
      %s47 = ssub.s32 %s13, %s20
      %p48 = scmp.eq.s32.totalorder %s47, 0
      %s50 = sadd.s32 %s49, 1
      %s51 = scalar_select %p48, %s49, %s50
      %p54 = pneg %p48
      %p55 = scmp.eq.s32.totalorder %s13, 1
      %p56 = por %p54, %p55
      %p57 = scmp.ne.s32.totalorder %s49, %s52
      %p58 = scmp.eq.s32.totalorder %s13, 0
      %p59 = por %p57, %p58
      %p60 = scmp.ne.s32.totalorder %s49, %s52
      %p61 = scmp.eq.s32.totalorder %s18, 1
      %p62 = por %p60, %p61
      %p63 = scmp.ne.s32.totalorder %s52, %s53
      %p64 = scmp.eq.s32.totalorder %s18, 0
      %p65 = por %p63, %p64
      %p66 = scmp.ne.s32.totalorder %s52, %s53
      %p67 = scmp.eq.s32.totalorder %s19, 1
      %p68 = por %p66, %p67
      %p70 = scmp.ne.s32.totalorder %s53, %s69
      %p71 = scmp.eq.s32.totalorder %s19, 0
      %p72 = por %p70, %p71
      %s74 = sadd.s32 %s73, 1
      %p77 = scmp.eq.s32.totalorder %s13, 1
      %p78 = scmp.ne.s32.totalorder %s73, %s75
      %p79 = scmp.eq.s32.totalorder %s13, 0
      %p80 = por %p78, %p79
      %p81 = scmp.ne.s32.totalorder %s73, %s75
      %p82 = scmp.eq.s32.totalorder %s18, 1
      %p83 = por %p81, %p82
      %p84 = scmp.ne.s32.totalorder %s75, %s76
      %p85 = scmp.eq.s32.totalorder %s18, 0
      %p86 = por %p84, %p85
      %p87 = scmp.ne.s32.totalorder %s75, %s76
      %p88 = scmp.eq.s32.totalorder %s19, 1
      %p89 = por %p87, %p88
      %p91 = scmp.ne.s32.totalorder %s76, %s90
      %p92 = scmp.eq.s32.totalorder %s19, 0
      %p93 = por %p91, %p92
      %s95 = sadd.s32 %s94, 1
      %p98 = scmp.eq.s32.totalorder %s13, 1
      %p99 = scmp.ne.s32.totalorder %s94, %s96
      %p100 = scmp.eq.s32.totalorder %s13, 0
      %p101 = por %p99, %p100
      %p102 = scmp.ne.s32.totalorder %s94, %s96
      %p103 = scmp.eq.s32.totalorder %s18, 1
      %p104 = por %p102, %p103
      %p105 = scmp.ne.s32.totalorder %s96, %s97
      %p106 = scmp.eq.s32.totalorder %s18, 0
      %p107 = por %p105, %p106
      %p108 = scmp.ne.s32.totalorder %s96, %s97
      %p109 = scmp.eq.s32.totalorder %s19, 1
      %p110 = por %p108, %p109
      %p112 = scmp.ne.s32.totalorder %s97, %s111
      %p113 = scmp.eq.s32.totalorder %s19, 0
      %p114 = por %p112, %p113
      %s115 = ssub.s32 %s13, %s20
      %p116 = scmp.eq.s32.totalorder %s115, 0
      %s118 = sadd.s32 %s117, 1
      %s119 = scalar_select %p116, %s117, %s118
      %p122 = pneg %p116
      %p123 = scmp.eq.s32.totalorder %s13, 1
      %p124 = por %p122, %p123
      %p125 = scmp.ne.s32.totalorder %s117, %s120
      %p126 = scmp.eq.s32.totalorder %s13, 0
      %p127 = por %p125, %p126
      %p128 = scmp.ne.s32.totalorder %s117, %s120
      %p129 = scmp.eq.s32.totalorder %s18, 1
      %p130 = por %p128, %p129
      %p131 = scmp.ne.s32.totalorder %s120, %s121
      %p132 = scmp.eq.s32.totalorder %s18, 0
      %p133 = por %p131, %p132
      %p134 = scmp.ne.s32.totalorder %s120, %s121
      %p135 = scmp.eq.s32.totalorder %s19, 1
      %p136 = por %p134, %p135
      %p138 = scmp.ne.s32.totalorder %s121, %s137
      %p139 = scmp.eq.s32.totalorder %s19, 0
      %p140 = por %p138, %p139
      %p141 = scmp.le.s32.totalorder 1, %s13
      %p142 = scmp.lt.s32.totalorder %s13, 3
      %p143 = pnand %p141, %p142
      %p144 = pneg %p143
      // Predicated region
      $region9: #{tpu_custom_call.1} parent=5 // pred_check
        _
      $region10: #{tpu_custom_call.1} parent=5 // pred_check_branch
        %146 = sbr.rel (%p143) target = $region12
      $region11: #{tpu_custom_call.1} parent=5 // pred_region
        %s147 = ssub.s32 %s13, 1
        // Predicated region
        $region13: #{tpu_custom_call.1} parent=11 // pred_check
          %p148 = pneg %p86
        $region14: #{tpu_custom_call.1} parent=11 // pred_check_branch
          %150 = sbr.rel (%p148) target = $region16
        $region15: #{tpu_custom_call.1} parent=11 // pred_region
          _
        $region16: #{tpu_custom_call.1} parent=11 // pred_fallthru
          _
        // Predicated region
        $region17: #{tpu_custom_call.1} parent=11 // pred_check
          %p151 = pneg %p107
        $region18: #{tpu_custom_call.1} parent=11 // pred_check_branch
          %153 = sbr.rel (%p151) target = $region20
        $region19: #{tpu_custom_call.1} parent=11 // pred_region
          _
        $region20: #{tpu_custom_call.1} parent=11 // pred_fallthru
          _
      $region12: #{tpu_custom_call.1} parent=5 // pred_fallthru
        _
      %p154 = scmp.lt.s32.totalorder %s13, 2
      // Predicated region
      $region21: #{tpu_custom_call.1} parent=5 // pred_check
        %p155 = pneg %p154
      $region22: #{tpu_custom_call.1} parent=5 // pred_check_branch
        %157 = sbr.rel (%p155) target = $region24
      $region23: #{tpu_custom_call.1} parent=5 // pred_region
        // Predicated region
        $region25: #{tpu_custom_call.1} parent=23 // pred_check
          %p158 = pneg %p33
        $region26: #{tpu_custom_call.1} parent=23 // pred_check_branch
          %160 = sbr.rel (%p158) target = $region28
        $region27: #{tpu_custom_call.1} parent=23 // pred_region
          %s161 = smul.u32 32, %s13
          %p162 = scmp.lt.s32.totalorder %s161, 63
          %s163 = scalar_select %p162, %s161, 63
          %s164 = smul.addr %s163, 4
          %s165 = scalar_lea.vmem %s0, %s164
          %s166 = smul.u32 32, %s13
        $region28: #{tpu_custom_call.1} parent=23 // pred_fallthru
          _
        // Predicated region
        $region29: #{tpu_custom_call.1} parent=23 // pred_check
          %p167 = pneg %p59
        $region30: #{tpu_custom_call.1} parent=23 // pred_check_branch
          %169 = sbr.rel (%p167) target = $region32
        $region31: #{tpu_custom_call.1} parent=23 // pred_region
          %s170 = smul.u32 32, %s13
          %p171 = scmp.lt.s32.totalorder %s170, 63
          %s172 = scalar_select %p171, %s170, 63
          %s173 = smul.addr %s172, 4
          %s174 = scalar_lea.vmem %s1, %s173
          %s175 = smul.u32 32, %s13
        $region32: #{tpu_custom_call.1} parent=23 // pred_fallthru
          _
      $region24: #{tpu_custom_call.1} parent=5 // pred_fallthru
        _
      %p176 = scmp.le.s32.totalorder 1, %s13
      %p177 = scmp.lt.s32.totalorder %s13, 3
      %p178 = pnand %p176, %p177
      %p179 = pneg %p178
      // Predicated region
      $region33: #{tpu_custom_call.1} parent=5 // pred_check
        _
      $region34: #{tpu_custom_call.1} parent=5 // pred_check_branch
        %181 = sbr.rel (%p178) target = $region36
      $region35: #{tpu_custom_call.1} parent=5 // pred_region
        %s182 = ssub.s32 %s13, 1
        %s183 = smul.u32 32, %s18
        %p184 = scmp.lt.s32.totalorder %s183, 63
        %s185 = scalar_select %p184, %s183, 63
        %s186 = smul.addr %s185, 4
        %s187 = scalar_lea.vmem %s0, %s186
        %p188 = pneg %p39
        %p189 = pneg %p36
        %s190 = smul.u32 32, %s18
        %p191 = scmp.lt.s32.totalorder %s190, 63
        %s192 = scalar_select %p191, %s190, 63
        %s193 = smul.addr %s192, 4
        %s194 = scalar_lea.vmem %s1, %s193
        %p195 = pneg %p65
        %p196 = pneg %p62
        %p197 = pneg %p86
        %p198 = pneg %p83
        %p199 = pneg %p107
        %p200 = pneg %p104
        %p201 = pneg %p133
        %p202 = pneg %p130
        %s203 = sand.u32 %s120, 1
        %s204 = scalar_lea.sflag [#allocation3], %s203
        %s205 = sand.u32 %s120, 1
        %s206 = smul.addr %s205, 256
        %s207 = scalar_lea.vmem [#allocation2], %s206
        %s208 = smul.u32 32, %s18
        %p209 = scmp.lt.s32.totalorder %s208, 63
        %s210 = scalar_select %p209, %s208, 63
        %s211 = smul.addr %s210, 4
        %s212 = scalar_lea.vmem %s0, %s211
        %s213 = smul.u32 32, %s18
        %s214 = smul.u32 32, %s18
        %p215 = scmp.lt.s32.totalorder %s214, 63
        %s216 = scalar_select %p215, %s214, 63
        %s217 = smul.addr %s216, 4
        %s218 = scalar_lea.vmem %s1, %s217
        %s219 = smul.u32 32, %s18
        %s220 = smul.u32 32, %s18
        %v222 = vld [vmem:[%s212] sm:$0xf]
        %v223 = vld [vmem:[%s212 + $0x4] sm:$0xf]
        %v224 = vld [vmem:[%s212 + $0x8] sm:$0xf]
        %v225 = vld [vmem:[%s212 + $0xc] sm:$0xf]
        %v226 = vld [vmem:[%s212 + $0x10] sm:$0xf]
        %v227 = vld [vmem:[%s212 + $0x14] sm:$0xf]
        %v228 = vld [vmem:[%s212 + $0x18] sm:$0xf]
        %v229 = vld [vmem:[%s212 + $0x1c] sm:$0xf]
        %v230 = vld [vmem:[%s212 + $0x20] sm:$0xf]
        %v231 = vld [vmem:[%s212 + $0x24] sm:$0xf]
        %v232 = vld [vmem:[%s212 + $0x28] sm:$0xf]
        %v233 = vld [vmem:[%s212 + $0x2c] sm:$0xf]
        %v234 = vld [vmem:[%s212 + $0x30] sm:$0xf]
        %v235 = vld [vmem:[%s212 + $0x34] sm:$0xf]
        %v236 = vld [vmem:[%s212 + $0x38] sm:$0xf]
        %v237 = vld [vmem:[%s212 + $0x3c] sm:$0xf]
        %v238 = vld [vmem:[%s212 + $0x40] sm:$0xf]
        %v239 = vld [vmem:[%s212 + $0x44] sm:$0xf]
        %v240 = vld [vmem:[%s212 + $0x48] sm:$0xf]
        %v241 = vld [vmem:[%s212 + $0x4c] sm:$0xf]
        %v242 = vld [vmem:[%s212 + $0x50] sm:$0xf]
        %v243 = vld [vmem:[%s212 + $0x54] sm:$0xf]
        %v244 = vld [vmem:[%s212 + $0x58] sm:$0xf]
        %v245 = vld [vmem:[%s212 + $0x5c] sm:$0xf]
        %v246 = vld [vmem:[%s212 + $0x60] sm:$0xf]
        %v247 = vld [vmem:[%s212 + $0x64] sm:$0xf]
        %v248 = vld [vmem:[%s212 + $0x68] sm:$0xf]
        %v249 = vld [vmem:[%s212 + $0x6c] sm:$0xf]
        %v250 = vld [vmem:[%s212 + $0x70] sm:$0xf]
        %v251 = vld [vmem:[%s212 + $0x74] sm:$0xf]
        %v252 = vld [vmem:[%s212 + $0x78] sm:$0xf]
        %v253 = vld [vmem:[%s212 + $0x7c] sm:$0xf]
        %v254 = vld [vmem:[%s2] sm:$0x3]
        %v255 = vld [vmem:[%s218] sm:$0xf]
        %v256 = vld [vmem:[%s218 + $0x4] sm:$0xf]
        %v257 = vld [vmem:[%s218 + $0x8] sm:$0xf]
        %v258 = vld [vmem:[%s218 + $0xc] sm:$0xf]
        %v259 = vld [vmem:[%s218 + $0x10] sm:$0xf]
        %v260 = vld [vmem:[%s218 + $0x14] sm:$0xf]
        %v261 = vld [vmem:[%s218 + $0x18] sm:$0xf]
        %v262 = vld [vmem:[%s218 + $0x1c] sm:$0xf]
        %v263 = vld [vmem:[%s218 + $0x20] sm:$0xf]
        %v264 = vld [vmem:[%s218 + $0x24] sm:$0xf]
        %v265 = vld [vmem:[%s218 + $0x28] sm:$0xf]
        %v266 = vld [vmem:[%s218 + $0x2c] sm:$0xf]
        %v267 = vld [vmem:[%s218 + $0x30] sm:$0xf]
        %v268 = vld [vmem:[%s218 + $0x34] sm:$0xf]
        %v269 = vld [vmem:[%s218 + $0x38] sm:$0xf]
        %v270 = vld [vmem:[%s218 + $0x3c] sm:$0xf]
        %v271 = vld [vmem:[%s218 + $0x40] sm:$0xf]
        %v272 = vld [vmem:[%s218 + $0x44] sm:$0xf]
        %v273 = vld [vmem:[%s218 + $0x48] sm:$0xf]
        %v274 = vld [vmem:[%s218 + $0x4c] sm:$0xf]
        %v275 = vld [vmem:[%s218 + $0x50] sm:$0xf]
        %v276 = vld [vmem:[%s218 + $0x54] sm:$0xf]
        %v277 = vld [vmem:[%s218 + $0x58] sm:$0xf]
        %v278 = vld [vmem:[%s218 + $0x5c] sm:$0xf]
        %v279 = vld [vmem:[%s218 + $0x60] sm:$0xf]
        %v280 = vld [vmem:[%s218 + $0x64] sm:$0xf]
        %v281 = vld [vmem:[%s218 + $0x68] sm:$0xf]
        %v282 = vld [vmem:[%s218 + $0x6c] sm:$0xf]
        %v283 = vld [vmem:[%s218 + $0x70] sm:$0xf]
        %v284 = vld [vmem:[%s218 + $0x74] sm:$0xf]
        %v285 = vld [vmem:[%s218 + $0x78] sm:$0xf]
        %v286 = vld [vmem:[%s218 + $0x7c] sm:$0xf]
        %v287 = vunpack.c.l.bf16 %v255
        %v288 = vunpack.c.l.bf16 %v256
        %v289 = vunpack.c.l.bf16 %v257
        %v290 = vunpack.c.l.bf16 %v258
        %v291 = vunpack.c.l.bf16 %v259
        %v292 = vunpack.c.l.bf16 %v260
        %v293 = vunpack.c.l.bf16 %v261
        %v294 = vunpack.c.l.bf16 %v262
        %v295 = vunpack.c.l.bf16 %v263
        %v296 = vunpack.c.l.bf16 %v264
        %v297 = vunpack.c.l.bf16 %v265
        %v298 = vunpack.c.l.bf16 %v266
        %v299 = vunpack.c.l.bf16 %v267
        %v300 = vunpack.c.l.bf16 %v268
        %v301 = vunpack.c.l.bf16 %v269
        %v302 = vunpack.c.l.bf16 %v270
        %v303 = vunpack.c.l.bf16 %v271
        %v304 = vunpack.c.l.bf16 %v272
        %v305 = vunpack.c.l.bf16 %v273
        %v306 = vunpack.c.l.bf16 %v274
        %v307 = vunpack.c.l.bf16 %v275
        %v308 = vunpack.c.l.bf16 %v276
        %v309 = vunpack.c.l.bf16 %v277
        %v310 = vunpack.c.l.bf16 %v278
        %v311 = vunpack.c.l.bf16 %v279
        %v312 = vunpack.c.l.bf16 %v280
        %v313 = vunpack.c.l.bf16 %v281
        %v314 = vunpack.c.l.bf16 %v282
        %v315 = vunpack.c.l.bf16 %v283
        %v316 = vunpack.c.l.bf16 %v284
        %v317 = vunpack.c.l.bf16 %v285
        %v318 = vunpack.c.l.bf16 %v286
        %v351 = vunpack.c.l.b16 %v222
        %v352 = vunpack.c.l.b16 %v223
        %v353 = vunpack.c.l.b16 %v224
        %v354 = vunpack.c.l.b16 %v225
        %v355 = vunpack.c.l.b16 %v226
        %v356 = vunpack.c.l.b16 %v227
        %v357 = vunpack.c.l.b16 %v228
        %v358 = vunpack.c.l.b16 %v229
        %v359 = vunpack.c.l.b16 %v230
        %v360 = vunpack.c.l.b16 %v231
        %v361 = vunpack.c.l.b16 %v232
        %v362 = vunpack.c.l.b16 %v233
        %v363 = vunpack.c.l.b16 %v234
        %v364 = vunpack.c.l.b16 %v235
        %v365 = vunpack.c.l.b16 %v236
        %v366 = vunpack.c.l.b16 %v237
        %v367 = vunpack.c.l.b16 %v238
        %v368 = vunpack.c.l.b16 %v239
        %v369 = vunpack.c.l.b16 %v240
        %v370 = vunpack.c.l.b16 %v241
        %v371 = vunpack.c.l.b16 %v242
        %v372 = vunpack.c.l.b16 %v243
        %v373 = vunpack.c.l.b16 %v244
        %v374 = vunpack.c.l.b16 %v245
        %v375 = vunpack.c.l.b16 %v246
        %v376 = vunpack.c.l.b16 %v247
        %v377 = vunpack.c.l.b16 %v248
        %v378 = vunpack.c.l.b16 %v249
        %v379 = vunpack.c.l.b16 %v250
        %v380 = vunpack.c.l.b16 %v251
        %v381 = vunpack.c.l.b16 %v252
        %v382 = vunpack.c.l.b16 %v253
        %v383 = vpack.c.b16 %v352, %v351
        %v384 = vpack.c.b16 %v354, %v353
        %v385 = vpack.c.b16 %v356, %v355
        %v386 = vpack.c.b16 %v358, %v357
        %v387 = vpack.c.b16 %v360, %v359
        %v388 = vpack.c.b16 %v362, %v361
        %v389 = vpack.c.b16 %v364, %v363
        %v390 = vpack.c.b16 %v366, %v365
        %v391 = vpack.c.b16 %v368, %v367
        %v392 = vpack.c.b16 %v370, %v369
        %v393 = vpack.c.b16 %v372, %v371
        %v394 = vpack.c.b16 %v374, %v373
        %v395 = vpack.c.b16 %v376, %v375
        %v396 = vpack.c.b16 %v378, %v377
        %v397 = vpack.c.b16 %v380, %v379
        %v398 = vpack.c.b16 %v382, %v381
        %vm399 = vcmask 31744
        %v401 = vsel %vm399, %v383, 0
        %v404 = vsel %vm399, %v384, 0
        %v407 = vsel %vm399, %v385, 0
        %v410 = vsel %vm399, %v386, 0
        %v413 = vsel %vm399, %v387, 0
        %v416 = vsel %vm399, %v388, 0
        %v419 = vsel %vm399, %v389, 0
        %v422 = vsel %vm399, %v390, 0
        %v425 = vsel %vm399, %v391, 0
        %v428 = vsel %vm399, %v392, 0
        %v431 = vsel %vm399, %v393, 0
        %v434 = vsel %vm399, %v394, 0
        %v437 = vsel %vm399, %v395, 0
        %v440 = vsel %vm399, %v396, 0
        %v443 = vsel %vm399, %v397, 0
        %v446 = vsel %vm399, %v398, 0
        %vm448 = vcmask 1041408
        %v450 = vsel %vm448, %v254, 0
        %452 = vmatpush.bf16.msra.mxu0 0
        %453 = vmatpush.bf16.msra.mxu0 0
        %454 = vmatpush.bf16.msra.mxu0 0
        %455 = vmatpush.bf16.msra.mxu0 0
        %456 = vmatpush.bf16.msra.mxu0 0
        %457 = vmatpush.bf16.msra.mxu0 0
        %458 = vmatpush.bf16.msra.mxu0 0
        %459 = vmatpush.bf16.msra.mxu0 %v450
        %460 = vmatmul.bf16.gmra.mxu0 %v401
        %v461 = vpop.f32.mrf.mxu0
        %v462 = vadd.f32 %v287, %v461
        %v463 = vpop.f32.mrf.mxu0
        %v464 = vadd.f32 %v288, %v463
        %465 = vmatmul.bf16.gmra.mxu0 %v404
        %v466 = vpop.f32.mrf.mxu0
        %v467 = vadd.f32 %v289, %v466
        %v468 = vpop.f32.mrf.mxu0
        %v469 = vadd.f32 %v290, %v468
        %470 = vmatmul.bf16.gmra.mxu0 %v407
        %v471 = vpop.f32.mrf.mxu0
        %v472 = vadd.f32 %v291, %v471
        %v473 = vpop.f32.mrf.mxu0
        %v474 = vadd.f32 %v292, %v473
        %475 = vmatmul.bf16.gmra.mxu0 %v410
        %v476 = vpop.f32.mrf.mxu0
        %v477 = vadd.f32 %v293, %v476
        %v478 = vpop.f32.mrf.mxu0
        %v479 = vadd.f32 %v294, %v478
        %480 = vmatmul.bf16.gmra.mxu0 %v413
        %v481 = vpop.f32.mrf.mxu0
        %v482 = vadd.f32 %v295, %v481
        %v483 = vpop.f32.mrf.mxu0
        %v484 = vadd.f32 %v296, %v483
        %485 = vmatmul.bf16.gmra.mxu0 %v416
        %v486 = vpop.f32.mrf.mxu0
        %v487 = vadd.f32 %v297, %v486
        %v488 = vpop.f32.mrf.mxu0
        %v489 = vadd.f32 %v298, %v488
        %490 = vmatmul.bf16.gmra.mxu0 %v419
        %v491 = vpop.f32.mrf.mxu0
        %v492 = vadd.f32 %v299, %v491
        %v493 = vpop.f32.mrf.mxu0
        %v494 = vadd.f32 %v300, %v493
        %495 = vmatmul.bf16.gmra.mxu0 %v422
        %v496 = vpop.f32.mrf.mxu0
        %v497 = vadd.f32 %v301, %v496
        %v498 = vpop.f32.mrf.mxu0
        %v499 = vadd.f32 %v302, %v498
        %500 = vmatmul.bf16.gmra.mxu0 %v425
        %v501 = vpop.f32.mrf.mxu0
        %v502 = vadd.f32 %v303, %v501
        %v503 = vpop.f32.mrf.mxu0
        %v504 = vadd.f32 %v304, %v503
        %505 = vmatmul.bf16.gmra.mxu0 %v428
        %v506 = vpop.f32.mrf.mxu0
        %v507 = vadd.f32 %v305, %v506
        %v508 = vpop.f32.mrf.mxu0
        %v509 = vadd.f32 %v306, %v508
        %510 = vmatmul.bf16.gmra.mxu0 %v431
        %v511 = vpop.f32.mrf.mxu0
        %v512 = vadd.f32 %v307, %v511
        %v513 = vpop.f32.mrf.mxu0
        %v514 = vadd.f32 %v308, %v513
        %515 = vmatmul.bf16.gmra.mxu0 %v434
        %v516 = vpop.f32.mrf.mxu0
        %v517 = vadd.f32 %v309, %v516
        %v518 = vpop.f32.mrf.mxu0
        %v519 = vadd.f32 %v310, %v518
        %520 = vmatmul.bf16.gmra.mxu0 %v437
        %v521 = vpop.f32.mrf.mxu0
        %v522 = vadd.f32 %v311, %v521
        %v523 = vpop.f32.mrf.mxu0
        %v524 = vadd.f32 %v312, %v523
        %525 = vmatmul.bf16.gmra.mxu0 %v440
        %v526 = vpop.f32.mrf.mxu0
        %v527 = vadd.f32 %v313, %v526
        %v528 = vpop.f32.mrf.mxu0
        %v529 = vadd.f32 %v314, %v528
        %530 = vmatmul.bf16.gmra.mxu0 %v443
        %v531 = vpop.f32.mrf.mxu0
        %v532 = vadd.f32 %v315, %v531
        %v533 = vpop.f32.mrf.mxu0
        %v534 = vadd.f32 %v316, %v533
        %535 = vmatmul.bf16.gmra.mxu0 %v446
        %v536 = vpop.f32.mrf.mxu0
        %v537 = vadd.f32 %v317, %v536
        %v538 = vpop.f32.mrf.mxu0
        %v539 = vadd.f32 %v318, %v538
        %540 = vdwg.mxu0
        %v541 = vld [vmem:[%s3] sm:$0x1]
        %v543 = vperm.slane %v541, 0
        %v545 = vadd.f32 %v462, %v543
        %v546 = vadd.f32 %v464, %v543
        %v547 = vadd.f32 %v467, %v543
        %v548 = vadd.f32 %v469, %v543
        %v549 = vadd.f32 %v472, %v543
        %v550 = vadd.f32 %v474, %v543
        %v551 = vadd.f32 %v477, %v543
        %v552 = vadd.f32 %v479, %v543
        %v553 = vadd.f32 %v482, %v543
        %v554 = vadd.f32 %v484, %v543
        %v555 = vadd.f32 %v487, %v543
        %v556 = vadd.f32 %v489, %v543
        %v557 = vadd.f32 %v492, %v543
        %v558 = vadd.f32 %v494, %v543
        %v559 = vadd.f32 %v497, %v543
        %v560 = vadd.f32 %v499, %v543
        %v561 = vadd.f32 %v502, %v543
        %v562 = vadd.f32 %v504, %v543
        %v563 = vadd.f32 %v507, %v543
        %v564 = vadd.f32 %v509, %v543
        %v565 = vadd.f32 %v512, %v543
        %v566 = vadd.f32 %v514, %v543
        %v567 = vadd.f32 %v517, %v543
        %v568 = vadd.f32 %v519, %v543
        %v569 = vadd.f32 %v522, %v543
        %v570 = vadd.f32 %v524, %v543
        %v571 = vadd.f32 %v527, %v543
        %v572 = vadd.f32 %v529, %v543
        %v573 = vadd.f32 %v532, %v543
        %v574 = vadd.f32 %v534, %v543
        %v575 = vadd.f32 %v537, %v543
        %v576 = vadd.f32 %v539, %v543
        %v577 = vmax.f32 %v545, 0.0
        %v578 = vmax.f32 %v546, 0.0
        %v579 = vmax.f32 %v547, 0.0
        %v580 = vmax.f32 %v548, 0.0
        %v581 = vmax.f32 %v549, 0.0
        %v582 = vmax.f32 %v550, 0.0
        %v583 = vmax.f32 %v551, 0.0
        %v584 = vmax.f32 %v552, 0.0
        %v585 = vmax.f32 %v553, 0.0
        %v586 = vmax.f32 %v554, 0.0
        %v587 = vmax.f32 %v555, 0.0
        %v588 = vmax.f32 %v556, 0.0
        %v589 = vmax.f32 %v557, 0.0
        %v590 = vmax.f32 %v558, 0.0
        %v591 = vmax.f32 %v559, 0.0
        %v592 = vmax.f32 %v560, 0.0
        %v593 = vmax.f32 %v561, 0.0
        %v594 = vmax.f32 %v562, 0.0
        %v595 = vmax.f32 %v563, 0.0
        %v596 = vmax.f32 %v564, 0.0
        %v597 = vmax.f32 %v565, 0.0
        %v598 = vmax.f32 %v566, 0.0
        %v599 = vmax.f32 %v567, 0.0
        %v600 = vmax.f32 %v568, 0.0
        %v601 = vmax.f32 %v569, 0.0
        %v602 = vmax.f32 %v570, 0.0
        %v603 = vmax.f32 %v571, 0.0
        %v604 = vmax.f32 %v572, 0.0
        %v605 = vmax.f32 %v573, 0.0
        %v606 = vmax.f32 %v574, 0.0
        %v607 = vmax.f32 %v575, 0.0
        %v608 = vmax.f32 %v576, 0.0
        %609 = vst [vmem:[%s207] sm:$0xff] %v577
        %610 = vst [vmem:[%s207 + $0x8] sm:$0xff] %v578
        %611 = vst [vmem:[%s207 + $0x10] sm:$0xff] %v579
        %612 = vst [vmem:[%s207 + $0x18] sm:$0xff] %v580
        %613 = vst [vmem:[%s207 + $0x20] sm:$0xff] %v581
        %614 = vst [vmem:[%s207 + $0x28] sm:$0xff] %v582
        %615 = vst [vmem:[%s207 + $0x30] sm:$0xff] %v583
        %616 = vst [vmem:[%s207 + $0x38] sm:$0xff] %v584
        %617 = vst [vmem:[%s207 + $0x40] sm:$0xff] %v585
        %618 = vst [vmem:[%s207 + $0x48] sm:$0xff] %v586
        %619 = vst [vmem:[%s207 + $0x50] sm:$0xff] %v587
        %620 = vst [vmem:[%s207 + $0x58] sm:$0xff] %v588
        %621 = vst [vmem:[%s207 + $0x60] sm:$0xff] %v589
        %622 = vst [vmem:[%s207 + $0x68] sm:$0xff] %v590
        %623 = vst [vmem:[%s207 + $0x70] sm:$0xff] %v591
        %624 = vst [vmem:[%s207 + $0x78] sm:$0xff] %v592
        %625 = vst [vmem:[%s207 + $0x80] sm:$0xff] %v593
        %626 = vst [vmem:[%s207 + $0x88] sm:$0xff] %v594
        %627 = vst [vmem:[%s207 + $0x90] sm:$0xff] %v595
        %628 = vst [vmem:[%s207 + $0x98] sm:$0xff] %v596
        %629 = vst [vmem:[%s207 + $0xa0] sm:$0xff] %v597
        %630 = vst [vmem:[%s207 + $0xa8] sm:$0xff] %v598
        %631 = vst [vmem:[%s207 + $0xb0] sm:$0xff] %v599
        %632 = vst [vmem:[%s207 + $0xb8] sm:$0xff] %v600
        %633 = vst [vmem:[%s207 + $0xc0] sm:$0xff] %v601
        %634 = vst [vmem:[%s207 + $0xc8] sm:$0xff] %v602
        %635 = vst [vmem:[%s207 + $0xd0] sm:$0xff] %v603
        %636 = vst [vmem:[%s207 + $0xd8] sm:$0xff] %v604
        %637 = vst [vmem:[%s207 + $0xe0] sm:$0xff] %v605
        %638 = vst [vmem:[%s207 + $0xe8] sm:$0xff] %v606
        %639 = vst [vmem:[%s207 + $0xf0] sm:$0xff] %v607
        %640 = vst [vmem:[%s207 + $0xf8] sm:$0xff] %v608
        %s641 = sand.u32 %s120, 1
        %s642 = scalar_lea.sflag [#allocation3], %s641
        %s643 = sand.u32 %s120, 1
        %s644 = smul.addr %s643, 256
        %s645 = scalar_lea.vmem [#allocation2], %s644
        // Predicated region
        $region37: #{tpu_custom_call.1} parent=35 // pred_check
          %p646 = pneg %p130
        $region38: #{tpu_custom_call.1} parent=35 // pred_check_branch
          %648 = sbr.rel (%p646) target = $region40
        $region39: #{tpu_custom_call.1} parent=35 // pred_region
          %s649 = smul.u32 32, %s18
          %651 = vsyncadd %s642, 0
          %s652 = smul.addr %s649, 8
          %s653 = scalar_lea.hbm %s4, %s652
          %s654 = sshll.u32 %s645, 4
          %s655 = int_to_ptr.vmem [resolvable:$true] %s654
          %s656 = sshll.u32 %s653, 4
          %s657 = int_to_ptr.hbm [resolvable:$true] %s656
          %662 = dma.vmem_to_hbm [thread:$0]  %s655, 4096, %s657, %s642, 128, 128, 8
        $region40: #{tpu_custom_call.1} parent=35 // pred_fallthru
          _
      $region36: #{tpu_custom_call.1} parent=5 // pred_fallthru
        _
      %p663 = scmp.le.s32.totalorder 2, %s13
      // Predicated region
      $region41: #{tpu_custom_call.1} parent=5 // pred_check
        %p664 = pneg %p663
      $region42: #{tpu_custom_call.1} parent=5 // pred_check_branch
        %666 = sbr.rel (%p664) target = $region44
      $region43: #{tpu_custom_call.1} parent=5 // pred_region
        %s667 = ssub.s32 %s13, 2
        // Predicated region
        $region45: #{tpu_custom_call.1} parent=43 // pred_check
          %p668 = pneg %p136
        $region46: #{tpu_custom_call.1} parent=43 // pred_check_branch
          %670 = sbr.rel (%p668) target = $region48
        $region47: #{tpu_custom_call.1} parent=43 // pred_region
          %s671 = sand.u32 %s121, 1
          %s672 = scalar_lea.sflag [#allocation3], %s671
          %s673 = sand.u32 %s121, 1
          %s674 = smul.addr %s673, 256
          %s675 = scalar_lea.vmem [#allocation2], %s674
          %677 = dma.done %s672, 4096
        $region48: #{tpu_custom_call.1} parent=43 // pred_fallthru
          _
      $region44: #{tpu_custom_call.1} parent=5 // pred_fallthru
        _
    $region6: #{tpu_custom_call.1} parent=1 // loop_footer
      %s17 = sadd.s32 1, %s13
    $region7: #{tpu_custom_call.1} parent=1 // loop_footer_branch
      %12 = sbr.rel target = $region3
    $region8: #{tpu_custom_call.1} parent=1 // loop_exit
      _
    %678 = vsyncpa [#allocation3], 1
    %s679 = scalar_lea.sflag [#allocation3], 1
    %680 = vsyncpa %s679, 1

</llo_original>
